<compile_context>
chip_gen: v5e
topology: v5e:2x2
jax: 0.10.0
libtpu: 0.0.40
codegen_flags: <defaults>
</compile_context>

<pallas_src>
import functools

import numpy as np
import jax
import jax.numpy as jnp
from jax.experimental import pallas as pl
from jax.experimental.pallas import tpu as pltpu


# ---------------------------------------------------------------------------
# Host-side construction of the fused Laplacian operators (tiny H*H / W*W).
# ---------------------------------------------------------------------------
_GAUSS_1D = np.asarray([0.05, 0.25, 0.4, 0.25, 0.05], dtype=np.float32)


def _conv_matrix(n, g=_GAUSS_1D):
    """A[out, src] for a replicate-padded 1D correlation with taps g."""
    half = len(g) // 2
    a = np.zeros((n, n), dtype=np.float32)
    idx = np.arange(n)
    for t, w in zip(range(-half, half + 1), g):
        src = np.clip(idx + t, 0, n - 1)
        np.add.at(a, (idx, src), w)
    return a


def _laplacian_operators(h, w):
    a_h = _conv_matrix(h)
    a_w = _conv_matrix(w)
    d_h = np.diag(np.where(np.arange(h) % 2 == 0, 2.0, 0.0).astype(np.float32))
    d_w = np.diag(np.where(np.arange(w) % 2 == 0, 2.0, 0.0).astype(np.float32))
    # lap(d) = d - L_H @ d @ R_W
    l_h = (a_h @ d_h @ a_h).astype(np.float32)          # (H, H)
    r_w = (a_w.T @ d_w @ a_w.T).astype(np.float32)      # (W, W)
    return l_h, r_w


def _block_diag(mat, copies):
    """copies x copies block-diagonal replication of mat (host-side, f32)."""
    n = mat.shape[0]
    out = np.zeros((copies * n, copies * n), dtype=np.float32)
    for b in range(copies):
        out[b * n:(b + 1) * n, b * n:(b + 1) * n] = mat
    return out


def _pick_block(nc, h, w, itemsize):
    """Largest divisor of nc within an MXU-row / VMEM-bytes budget."""
    if h % 8 != 0:
        # Keep the in-kernel (bsz*h, w) reshape a pure layout no-op.
        target = 1
    else:
        row_cap = max(1, 256 // h)                               # fused rows <= 256
        byte_cap = max(1, (2 * 1024 * 1024) // max(1, h * w * itemsize))
        target = max(1, min(nc, row_cap, byte_cap))
    for b in range(target, 0, -1):
        if nc % b == 0:
            return b
    return 1


# ---------------------------------------------------------------------------
# Kernel
# ---------------------------------------------------------------------------
def _edge_loss_kernel(x_ref, y_ref, l_ref, r_ref, o_ref, acc_ref, *,
                      bsz, h, w, scale, precision):
    i = pl.program_id(0)

    @pl.when(i == 0)
    def _():
        acc_ref[...] = jnp.zeros_like(acc_ref)

    # d = x - y in the native input dtype (bf16 inputs stay bf16 on the wire).
    d = x_ref[...] - y_ref[...]                      # (bsz, h, w)
    d2 = d.reshape(bsz * h, w)                       # fuse batch into MXU M dim

    # lap(d) = d - L_big @ (d @ R): two plain 2-D MXU matmuls.
    # No broadcasts, no batched matmuls, no transposes.  L_big is block-diagonal,
    # so each of the bsz images in the block gets its own (H,H) operator.
    u = jnp.dot(d2, r_ref[...],
                preferred_element_type=jnp.float32, precision=precision)
    t = jnp.dot(l_ref[...], u,
                preferred_element_type=jnp.float32, precision=precision)

    lap = d2.astype(jnp.float32) - t
    sq = lap * lap

    # Fold the bsz images together (plain VPU adds across vregs, no XLU) and
    # accumulate into the single resident (H, W) f32 scratch.
    acc_ref[...] += sq.reshape(bsz, h, w).sum(axis=0)

    @pl.when(i == pl.num_programs(0) - 1)
    def _():
        # One cross-lane reduce + scale, once per kernel.  Output is SMEM.
        o_ref[0, 0] = (jnp.sum(acc_ref[...]) * scale).astype(o_ref.dtype)


# ---------------------------------------------------------------------------
# Wrapper
# ---------------------------------------------------------------------------
def edge_loss(x, y, loss_weight=1.0, precision=None):
    """Pallas implementation of EdgeLoss.forward. Inputs are NCHW."""
    assert x.shape == y.shape
    n, c, h, w = x.shape
    nc = n * c
    itemsize = jnp.dtype(x.dtype).itemsize

    bsz = _pick_block(nc, h, w, itemsize)
    assert nc % bsz == 0
    steps = nc // bsz

    l_h, r_w = _laplacian_operators(h, w)
    l_big = jnp.asarray(_block_diag(l_h, bsz))       # (bsz*H, bsz*H) f32
    r_w = jnp.asarray(r_w)                           # (W, W)        f32

    # Pure reshape (no data movement): fuse N and C, keep (H, W) as the tile.
    x3 = x.reshape(nc, h, w)
    y3 = y.reshape(nc, h, w)

    # Explicit VMEM budget: 2 inputs x 2 pipeline buffers x block, the two
    # (grid-invariant) operators, and the (H, W) accumulator.  Clamp below
    # v7x's 64 MiB physical VMEM.
    in_block_bytes = bsz * h * w * itemsize
    op_bytes = (bsz * h) ** 2 * 4 + w * w * 4
    acc_bytes = h * w * 4
    needed = 4 * in_block_bytes + 2 * op_bytes + acc_bytes + (1 << 20)
    vmem_limit = int(min(max(2 * needed, 32 << 20), 56 << 20))

    kernel = functools.partial(
        _edge_loss_kernel,
        bsz=bsz, h=h, w=w,
        scale=float(loss_weight) / float(n * c * h * w),
        precision=precision,
    )

    out = pl.pallas_call(
        kernel,
        out_shape=jax.ShapeDtypeStruct((1, 1), jnp.float32),
        grid_spec=pltpu.PrefetchScalarGridSpec(
            num_scalar_prefetch=0,
            grid=(steps,),
            in_specs=[
                pl.BlockSpec((bsz, h, w), lambda i: (i, 0, 0)),
                pl.BlockSpec((bsz, h, w), lambda i: (i, 0, 0)),
                pl.BlockSpec((bsz * h, bsz * h), lambda i: (0, 0)),  # L (invariant)
                pl.BlockSpec((w, w), lambda i: (0, 0)),              # R (invariant)
            ],
            out_specs=pl.BlockSpec(memory_space=pltpu.SMEM),
            scratch_shapes=[pltpu.VMEM((h, w), jnp.float32)],
        ),
        compiler_params=pltpu.CompilerParams(
            dimension_semantics=("arbitrary",),
            vmem_limit_bytes=vmem_limit,
        ),
    )(x3, y3, l_big, r_w)
    return out[0, 0]


# ---------------------------------------------------------------------------
# Pure-JAX reference: literal translation of the PyTorch module.
# ---------------------------------------------------------------------------
def _reference(x, y, loss_weight=1.0):
    g2 = jnp.asarray(np.outer(_GAUSS_1D, _GAUSS_1D))
    _, _, h, w = x.shape

    def conv_gauss(img):
        p = jnp.pad(img, ((0, 0), (0, 0), (2, 2), (2, 2)), mode="edge")
        out = jnp.zeros_like(img)
        for i in range(5):
            for j in range(5):
                out = out + g2[i, j] * p[:, :, i:i + h, j:j + w]
        return out

    def lap(cur):
        filt = conv_gauss(cur)
        down = filt[:, :, ::2, ::2]
        newf = jnp.zeros_like(filt).at[:, :, ::2, ::2].set(down * 4.0)
        return cur - conv_gauss(newf)

    return loss_weight * jnp.mean((lap(x) - lap(y)) ** 2)


if __name__ == "__main__":
    key = jax.random.PRNGKey(0)
    k1, k2 = jax.random.split(key)
    # NCHW batch; the PyTorch module hardcodes 3 channels.
    x = jax.random.normal(k1, (2, 3, 16, 16), dtype=jnp.float32)
    y = jax.random.normal(k2, (2, 3, 16, 16), dtype=jnp.float32)

    out = edge_loss(x, y, loss_weight=1.0)
    out = jax.block_until_ready(out)

    ref = _reference(x, y, 1.0)
    # Tolerance accounts for default-precision MXU matmuls vs the exact VPU reference.
    assert jnp.allclose(out, ref, rtol=1e-2, atol=1e-5), (out, ref)
    print("KERNEL_OK")
</pallas_src>

<mosaic_0001>
module attributes {stable_mosaic.version = 11 : i64} {
  func.func @_edge_loss_kernel(%arg0: i32, %arg1: memref<6x16x16xf32, #tpu.memory_space<vmem>>, %arg2: memref<6x16x16xf32, #tpu.memory_space<vmem>>, %arg3: memref<96x96xf32, #tpu.memory_space<vmem>>, %arg4: memref<16x16xf32, #tpu.memory_space<vmem>>, %arg5: memref<1x1xf32, #tpu.memory_space<smem>>, %arg6: memref<16x16xf32, #tpu.memory_space<vmem>>) attributes {dimension_semantics = [#tpu.dimension_semantics<arbitrary>], iteration_bounds = array<i64: 1>, scalar_prefetch = 0 : i64, scratch_operands = 1 : i64, tpu.core_type = #tpu.core_type<tc>, window_params = [{transform_indices = @transform_0, window_bounds = array<i64: 6, 16, 16>}, {transform_indices = @transform_1, window_bounds = array<i64: 6, 16, 16>}, {pipeline_mode = #tpu.pipeline_mode<synchronous>, transform_indices = @transform_2, window_bounds = array<i64: 96, 96>}, {pipeline_mode = #tpu.pipeline_mode<synchronous>, transform_indices = @transform_3, window_bounds = array<i64: 16, 16>}, {transform_indices = @transform_4, window_bounds = array<i64: 1, 1>}]} {
    %c0_i32 = arith.constant 0 : i32
    %0 = arith.cmpi eq, %arg0, %c0_i32 : i32
    %1 = arith.extui %0 : i1 to i32
    %c0_i32_0 = arith.constant 0 : i32
    %2 = arith.cmpi ne, %1, %c0_i32_0 : i32
    scf.if %2 {
      %cst_18 = arith.constant 0.000000e+00 : f32
      %21 = vector.broadcast %cst_18 : f32 to vector<16x16xf32>
      %c0_19 = arith.constant 0 : index
      %c0_20 = arith.constant 0 : index
      %22 = vector.load %arg6[%c0_19, %c0_20] : memref<16x16xf32, #tpu.memory_space<vmem>>, vector<16x16xf32>
      tpu.vector_store %arg6[%c0_19, %c0_20], %21 {strides = array<i32>} : memref<16x16xf32, #tpu.memory_space<vmem>>, vector<16x16xf32>,
    } else {
    }
    %c0 = arith.constant 0 : index
    %c0_1 = arith.constant 0 : index
    %c0_2 = arith.constant 0 : index
    %3 = vector.load %arg1[%c0, %c0_1, %c0_2] : memref<6x16x16xf32, #tpu.memory_space<vmem>>, vector<6x16x16xf32>
    %c0_3 = arith.constant 0 : index
    %c0_4 = arith.constant 0 : index
    %c0_5 = arith.constant 0 : index
    %4 = vector.load %arg2[%c0_3, %c0_4, %c0_5] : memref<6x16x16xf32, #tpu.memory_space<vmem>>, vector<6x16x16xf32>
    %5 = arith.subf %3, %4 : vector<6x16x16xf32>
    %6 = vector.shape_cast %5 : vector<6x16x16xf32> to vector<96x16xf32>
    %c0_6 = arith.constant 0 : index
    %c0_7 = arith.constant 0 : index
    %7 = vector.load %arg4[%c0_6, %c0_7] : memref<16x16xf32, #tpu.memory_space<vmem>>, vector<16x16xf32>
    %cst = arith.constant dense<0.000000e+00> : vector<96x16xf32>
    %8 = tpu.matmul %6, %7, %cst {dimension_numbers = #tpu.dot_dimension_numbers<[1], [0], [0], [1], [0, 0, 1, 1], [], []>} : vector<96x16xf32>, vector<16x16xf32>, vector<96x16xf32> -> vector<96x16xf32>
    %c0_8 = arith.constant 0 : index
    %c0_9 = arith.constant 0 : index
    %9 = vector.load %arg3[%c0_8, %c0_9] : memref<96x96xf32, #tpu.memory_space<vmem>>, vector<96x96xf32>
    %cst_10 = arith.constant dense<0.000000e+00> : vector<96x16xf32>
    %10 = tpu.matmul %9, %8, %cst_10 {dimension_numbers = #tpu.dot_dimension_numbers<[1], [0], [0], [1], [0, 0, 1, 1], [], []>} : vector<96x96xf32>, vector<96x16xf32>, vector<96x16xf32> -> vector<96x16xf32>
    %11 = arith.subf %6, %10 : vector<96x16xf32>
    %12 = arith.mulf %11, %11 : vector<96x16xf32>
    %c0_11 = arith.constant 0 : index
    %c0_12 = arith.constant 0 : index
    %13 = vector.load %arg6[%c0_11, %c0_12] : memref<16x16xf32, #tpu.memory_space<vmem>>, vector<16x16xf32>
    %14 = vector.shape_cast %12 : vector<96x16xf32> to vector<6x16x16xf32>
    %cst_13 = arith.constant dense<0.000000e+00> : vector<16x16xf32>
    %15 = vector.multi_reduction <add>, %14, %cst_13 [0] : vector<6x16x16xf32> to vector<16x16xf32>
    %16 = arith.addf %13, %15 : vector<16x16xf32>
    %c0_14 = arith.constant 0 : index
    %c0_15 = arith.constant 0 : index
    %17 = vector.load %arg6[%c0_14, %c0_15] : memref<16x16xf32, #tpu.memory_space<vmem>>, vector<16x16xf32>
    tpu.vector_store %arg6[%c0_14, %c0_15], %16 {strides = array<i32>} : memref<16x16xf32, #tpu.memory_space<vmem>>, vector<16x16xf32>,
    %c0_i32_16 = arith.constant 0 : i32
    %18 = arith.cmpi eq, %arg0, %c0_i32_16 : i32
    %19 = arith.extui %18 : i1 to i32
    %c0_i32_17 = arith.constant 0 : i32
    %20 = arith.cmpi ne, %19, %c0_i32_17 : i32
    scf.if %20 {
      %c0_18 = arith.constant 0 : index
      %c0_19 = arith.constant 0 : index
      %21 = vector.load %arg6[%c0_18, %c0_19] : memref<16x16xf32, #tpu.memory_space<vmem>>, vector<16x16xf32>
      %22 = vector.shape_cast %21 : vector<16x16xf32> to vector<1x16x16xf32>
      %cst_20 = arith.constant dense<0.000000e+00> : vector<1xf32>
      %23 = vector.multi_reduction <add>, %22, %cst_20 [1, 2] : vector<1x16x16xf32> to vector<1xf32>
      %24 = vector.shape_cast %23 : vector<1xf32> to vector<1x1x1xf32>
      %25 = vector.extract %24[0, 0, 0] : f32 from vector<1x1x1xf32>
      %cst_21 = arith.constant 6.51041686E-4 : f32
      %26 = arith.mulf %25, %cst_21 : f32
      %c0_22 = arith.constant 0 : index
      %c0_23 = arith.constant 0 : index
      %27 = memref.load %arg5[%c0_22, %c0_23] : memref<1x1xf32, #tpu.memory_space<smem>>
      memref.store %26, %arg5[%c0_22, %c0_23] : memref<1x1xf32, #tpu.memory_space<smem>>
    } else {
    }
    return
  }
  func.func @transform_0(%arg0: i32) -> (i32, i32, i32) {
    %c0_i32 = arith.constant 0 : i32
    %c0_i32_0 = arith.constant 0 : i32
    %c0_i32_1 = arith.constant 0 : i32
    return %arg0, %c0_i32, %c0_i32_0 : i32, i32, i32
  }
  func.func @transform_1(%arg0: i32) -> (i32, i32, i32) {
    %c0_i32 = arith.constant 0 : i32
    %c0_i32_0 = arith.constant 0 : i32
    %c0_i32_1 = arith.constant 0 : i32
    return %arg0, %c0_i32, %c0_i32_0 : i32, i32, i32
  }
  func.func @transform_2(%arg0: i32) -> (i32, i32) {
    %c0_i32 = arith.constant 0 : i32
    %c0_i32_0 = arith.constant 0 : i32
    %c0_i32_1 = arith.constant 0 : i32
    return %c0_i32, %c0_i32_0 : i32, i32
  }
  func.func @transform_3(%arg0: i32) -> (i32, i32) {
    %c0_i32 = arith.constant 0 : i32
    %c0_i32_0 = arith.constant 0 : i32
    %c0_i32_1 = arith.constant 0 : i32
    return %c0_i32, %c0_i32_0 : i32, i32
  }
  func.func @transform_4(%arg0: i32) -> (i32, i32) {
    %c0_i32 = arith.constant 0 : i32
    %c0_i32_0 = arith.constant 0 : i32
    %c0_i32_1 = arith.constant 0 : i32
    return %c0_i32, %c0_i32_0 : i32, i32
  }
}

</mosaic_0001>

<llo_original>
// kernel: tpu_custom_call.1
$region0: #{tpu_custom_call.1}
  #allocation0 [shape = 'u32[]', space=smem, size = 0x4, offset = 0x4, fixed_abs, tag = 'smem constant byte address 0x4 - core index']
  #allocation1 [shape = 'u32[72,128]{1,0:T(1,128)}', space=vmem, size = 0x9000, scoped, tag = 'internal scratch']
  #allocation2 [shape = 'f32[16,16]{1,0:T(8,128)}', space=vmem, size = 0x2000, scoped, tag = 'scratch operand']
  %s0 = inlined_call_operand.hbm [shape: f32[6,16,16], index: 0, kind: input, shape index: {}]
  %s1 = inlined_call_operand.hbm [shape: f32[6,16,16], index: 1, kind: input, shape index: {}]
  %s2 = inlined_call_operand.hbm [shape: f32[96,96], index: 2, kind: input, shape index: {}]
  %s3 = inlined_call_operand.hbm [shape: f32[16,16], index: 3, kind: input, shape index: {}]
  %s4 = inlined_call_operand.hbm [shape: f32[1,1], index: 4, kind: output, shape index: {}]
  %s5 = sld [smem:[#allocation0]]
  $region50: #{tpu_custom_call.1} parent=0
    _
  %s7 = ssub.s32 1, %s5
  %s8 = scalar_select 0, %s7, %s5
  $region1: #{tpu_custom_call.1} parent=0
    #allocation3 [shape = 'u8[49152]{0}', space=vmem, size = 0xc000, scoped, tag = 'input window, operand 0, single buffered']
    #allocation4 [shape = 's32[1]{0}', space=sflag, size = 0x4, scoped, tag = 'scoped memory for tpu_custom_call.1']
    #allocation5 [shape = 's32[1]{0}', space=sflag, size = 0x4, scoped, tag = 'scoped memory for tpu_custom_call.1']
    #allocation6 [shape = 'u8[49152]{0}', space=vmem, size = 0xc000, scoped, tag = 'input window, operand 1, single buffered']
    #allocation7 [shape = 's32[1]{0}', space=sflag, size = 0x4, scoped, tag = 'scoped memory for tpu_custom_call.1']
    #allocation8 [shape = 'u8[49152]{0}', space=vmem, size = 0xc000, scoped, tag = 'input window, operand 2, single buffered']
    #allocation9 [shape = 'u8[8192]{0}', space=vmem, size = 0x2000, scoped, tag = 'input window, operand 3, single buffered']
    #allocation10 [shape = 's32[1]{0}', space=sflag, size = 0x4, scoped, tag = 'scoped memory for tpu_custom_call.1']
    #allocation11 [shape = 'u8[512]{0}', space=smem, size = 0x200, scoped, tag = 'output window, operand 0, single buffered']
    %9 = vsyncpa [#allocation4], 0
    %10 = vsyncpa [#allocation7], 0
    %11 = vsyncpa [#allocation10], 0
    %12 = vsyncpa [#allocation5], 0
    // Predicated region
    $region2: #{tpu_custom_call.1} parent=1 // pred_check
      _
    $region3: #{tpu_custom_call.1} parent=1 // pred_check_branch
      %14 = sbr.rel (0) target = $region5
    $region4: #{tpu_custom_call.1} parent=1 // pred_region
      %16 = vsyncadd [#allocation4], 0
      %s17 = sshll.u32 %s0, 4
      %s18 = int_to_ptr.hbm [resolvable:$true] %s17
      %s19 = sshll.u32 [#allocation3], 4
      %s20 = int_to_ptr.vmem [resolvable:$true] %s19
      %25 = dma.hbm_to_vmem [thread:$0]  %s18, 1536, %s20, [#allocation4], 128, 128, 8
    $region5: #{tpu_custom_call.1} parent=1 // pred_fallthru
      _
    // Predicated region
    $region6: #{tpu_custom_call.1} parent=1 // pred_check
      _
    $region7: #{tpu_custom_call.1} parent=1 // pred_check_branch
      %27 = sbr.rel (0) target = $region9
    $region8: #{tpu_custom_call.1} parent=1 // pred_region
      %29 = vsyncadd [#allocation7], 0
      %s30 = sshll.u32 %s1, 4
      %s31 = int_to_ptr.hbm [resolvable:$true] %s30
      %s32 = sshll.u32 [#allocation6], 4
      %s33 = int_to_ptr.vmem [resolvable:$true] %s32
      %38 = dma.hbm_to_vmem [thread:$0]  %s31, 1536, %s33, [#allocation7], 128, 128, 8
    $region9: #{tpu_custom_call.1} parent=1 // pred_fallthru
      _
    // Predicated region
    $region10: #{tpu_custom_call.1} parent=1 // pred_check
      _
    $region11: #{tpu_custom_call.1} parent=1 // pred_check_branch
      %40 = sbr.rel (0) target = $region13
    $region12: #{tpu_custom_call.1} parent=1 // pred_region
      %42 = vsyncadd [#allocation7], 0
      %s43 = sshll.u32 %s2, 4
      %s44 = int_to_ptr.hbm [resolvable:$true] %s43
      %s45 = sshll.u32 [#allocation8], 4
      %s46 = int_to_ptr.vmem [resolvable:$true] %s45
      %51 = dma.hbm_to_vmem [thread:$0]  %s44, 1536, %s46, [#allocation7], 128, 128, 8
    $region13: #{tpu_custom_call.1} parent=1 // pred_fallthru
      _
    // Predicated region
    $region14: #{tpu_custom_call.1} parent=1 // pred_check
      _
    $region15: #{tpu_custom_call.1} parent=1 // pred_check_branch
      %53 = sbr.rel (0) target = $region17
    $region16: #{tpu_custom_call.1} parent=1 // pred_region
      %55 = vsyncadd [#allocation10], 0
      %s56 = sshll.u32 %s3, 4
      %s57 = int_to_ptr.hbm [resolvable:$true] %s56
      %s58 = sshll.u32 [#allocation9], 4
      %s59 = int_to_ptr.vmem [resolvable:$true] %s58
      %64 = dma.hbm_to_vmem [thread:$0]  %s57, 256, %s59, [#allocation10], 128, 128, 8
    $region17: #{tpu_custom_call.1} parent=1 // pred_fallthru
      _
    // Predicated region
    $region18: #{tpu_custom_call.1} parent=1 // pred_check
      _
    $region19: #{tpu_custom_call.1} parent=1 // pred_check_branch
      %66 = sbr.rel (0) target = $region21
    $region20: #{tpu_custom_call.1} parent=1 // pred_region
      %68 = dma.done [#allocation4], 1536
    $region21: #{tpu_custom_call.1} parent=1 // pred_fallthru
      _
    // Predicated region
    $region22: #{tpu_custom_call.1} parent=1 // pred_check
      _
    $region23: #{tpu_custom_call.1} parent=1 // pred_check_branch
      %70 = sbr.rel (0) target = $region25
    $region24: #{tpu_custom_call.1} parent=1 // pred_region
      %72 = dma.done [#allocation7], 1536
    $region25: #{tpu_custom_call.1} parent=1 // pred_fallthru
      _
    // Predicated region
    $region26: #{tpu_custom_call.1} parent=1 // pred_check
      _
    $region27: #{tpu_custom_call.1} parent=1 // pred_check_branch
      %74 = sbr.rel (0) target = $region29
    $region28: #{tpu_custom_call.1} parent=1 // pred_region
      %76 = dma.done [#allocation7], 1536
    $region29: #{tpu_custom_call.1} parent=1 // pred_fallthru
      _
    // Predicated region
    $region30: #{tpu_custom_call.1} parent=1 // pred_check
      _
    $region31: #{tpu_custom_call.1} parent=1 // pred_check_branch
      %78 = sbr.rel (0) target = $region33
    $region32: #{tpu_custom_call.1} parent=1 // pred_region
      %80 = dma.done [#allocation10], 256
    $region33: #{tpu_custom_call.1} parent=1 // pred_fallthru
      _
    %p81 = scmp.eq.s32.totalorder 0, 0
    // Predicated region
    $region34: #{tpu_custom_call.1} parent=1 // pred_check
      %p82 = pneg %p81
    $region35: #{tpu_custom_call.1} parent=1 // pred_check_branch
      %84 = sbr.rel (%p82) target = $region37
    $region36: #{tpu_custom_call.1} parent=1 // pred_region
      %vm85 = vcmask 130048
      %86 = vst.msk [vmem:[#allocation2] sm:$0xff] %vm85, 0.0
      %87 = vst.msk [vmem:[#allocation2 + $0x8] sm:$0xff] %vm85, 0.0
    $region37: #{tpu_custom_call.1} parent=1 // pred_fallthru
      _
    %v88 = vld [vmem:[#allocation3] sm:$0xff]
    %v89 = vld [vmem:[#allocation3 + $0x8] sm:$0xff]
    %v90 = vld [vmem:[#allocation3 + $0x10] sm:$0xff]
    %v91 = vld [vmem:[#allocation3 + $0x18] sm:$0xff]
    %v92 = vld [vmem:[#allocation3 + $0x20] sm:$0xff]
    %v93 = vld [vmem:[#allocation3 + $0x28] sm:$0xff]
    %v94 = vld [vmem:[#allocation3 + $0x30] sm:$0xff]
    %v95 = vld [vmem:[#allocation3 + $0x38] sm:$0xff]
    %v96 = vld [vmem:[#allocation3 + $0x40] sm:$0xff]
    %v97 = vld [vmem:[#allocation3 + $0x48] sm:$0xff]
    %v98 = vld [vmem:[#allocation3 + $0x50] sm:$0xff]
    %v99 = vld [vmem:[#allocation3 + $0x58] sm:$0xff]
    %v100 = vld [vmem:[#allocation6] sm:$0xff]
    %v101 = vld [vmem:[#allocation6 + $0x8] sm:$0xff]
    %v102 = vld [vmem:[#allocation6 + $0x10] sm:$0xff]
    %v103 = vld [vmem:[#allocation6 + $0x18] sm:$0xff]
    %v104 = vld [vmem:[#allocation6 + $0x20] sm:$0xff]
    %v105 = vld [vmem:[#allocation6 + $0x28] sm:$0xff]
    %v106 = vld [vmem:[#allocation6 + $0x30] sm:$0xff]
    %v107 = vld [vmem:[#allocation6 + $0x38] sm:$0xff]
    %v108 = vld [vmem:[#allocation6 + $0x40] sm:$0xff]
    %v109 = vld [vmem:[#allocation6 + $0x48] sm:$0xff]
    %v110 = vld [vmem:[#allocation6 + $0x50] sm:$0xff]
    %v111 = vld [vmem:[#allocation6 + $0x58] sm:$0xff]
    %v112 = vsub.f32 %v88, %v100
    %v113 = vsub.f32 %v89, %v101
    %v114 = vsub.f32 %v90, %v102
    %v115 = vsub.f32 %v91, %v103
    %v116 = vsub.f32 %v92, %v104
    %v117 = vsub.f32 %v93, %v105
    %v118 = vsub.f32 %v94, %v106
    %v119 = vsub.f32 %v95, %v107
    %v120 = vsub.f32 %v96, %v108
    %v121 = vsub.f32 %v97, %v109
    %v122 = vsub.f32 %v98, %v110
    %v123 = vsub.f32 %v99, %v111
    %v124 = vld [vmem:[#allocation9] sm:$0xff]
    %v125 = vld [vmem:[#allocation9 + $0x8] sm:$0xff]
    %vm126 = vcmask 130048
    %v128 = vsel %vm126, %v112, 0
    %v131 = vsel %vm126, %v113, 0
    %v134 = vsel %vm126, %v114, 0
    %v137 = vsel %vm126, %v115, 0
    %v140 = vsel %vm126, %v116, 0
    %v143 = vsel %vm126, %v117, 0
    %v146 = vsel %vm126, %v118, 0
    %v149 = vsel %vm126, %v119, 0
    %v152 = vsel %vm126, %v120, 0
    %v155 = vsel %vm126, %v121, 0
    %v158 = vsel %vm126, %v122, 0
    %v161 = vsel %vm126, %v123, 0
    %163 = vmatpush.msra.mxu0 0.0
    %164 = vmatpush.msra.mxu0 0.0
    %165 = vmatpush.msra.mxu0 0.0
    %166 = vmatpush.msra.mxu0 0.0
    %167 = vmatpush.msra.mxu0 0.0
    %168 = vmatpush.msra.mxu0 0.0
    %169 = vmatpush.msra.mxu0 0.0
    %170 = vmatpush.msra.mxu0 0.0
    %171 = vmatpush.msra.mxu0 0.0
    %172 = vmatpush.msra.mxu0 0.0
    %173 = vmatpush.msra.mxu0 0.0
    %174 = vmatpush.msra.mxu0 0.0
    %175 = vmatpush.msra.mxu0 0.0
    %176 = vmatpush.msra.mxu0 0.0
    %177 = vmatpush.msra.mxu0 %v125
    %178 = vmatpush.msra.mxu0 %v124
    %179 = vmatmul.f32.gmra.mxu0 %v128
    %v180 = vpop.f32.mrf.mxu0
    %v181 = vadd.f32 0.0, %v180
    %182 = vmatmul.f32.gmra.mxu0 %v131
    %v183 = vpop.f32.mrf.mxu0
    %v184 = vadd.f32 0.0, %v183
    %185 = vmatmul.f32.gmra.mxu0 %v134
    %v186 = vpop.f32.mrf.mxu0
    %v187 = vadd.f32 0.0, %v186
    %188 = vmatmul.f32.gmra.mxu0 %v137
    %v189 = vpop.f32.mrf.mxu0
    %v190 = vadd.f32 0.0, %v189
    %191 = vmatmul.f32.gmra.mxu0 %v140
    %v192 = vpop.f32.mrf.mxu0
    %v193 = vadd.f32 0.0, %v192
    %194 = vmatmul.f32.gmra.mxu0 %v143
    %v195 = vpop.f32.mrf.mxu0
    %v196 = vadd.f32 0.0, %v195
    %197 = vmatmul.f32.gmra.mxu0 %v146
    %v198 = vpop.f32.mrf.mxu0
    %v199 = vadd.f32 0.0, %v198
    %200 = vmatmul.f32.gmra.mxu0 %v149
    %v201 = vpop.f32.mrf.mxu0
    %v202 = vadd.f32 0.0, %v201
    %203 = vmatmul.f32.gmra.mxu0 %v152
    %v204 = vpop.f32.mrf.mxu0
    %v205 = vadd.f32 0.0, %v204
    %206 = vmatmul.f32.gmra.mxu0 %v155
    %v207 = vpop.f32.mrf.mxu0
    %v208 = vadd.f32 0.0, %v207
    %209 = vmatmul.f32.gmra.mxu0 %v158
    %v210 = vpop.f32.mrf.mxu0
    %v211 = vadd.f32 0.0, %v210
    %212 = vmatmul.f32.gmra.mxu0 %v161
    %v213 = vpop.f32.mrf.mxu0
    %v214 = vadd.f32 0.0, %v213
    %215 = vdwg.mxu0
    %v216 = vld [vmem:[#allocation8] sm:$0xff]
    %v217 = vld [vmem:[#allocation8 + $0x8] sm:$0xff]
    %v218 = vld [vmem:[#allocation8 + $0x10] sm:$0xff]
    %v219 = vld [vmem:[#allocation8 + $0x18] sm:$0xff]
    %v220 = vld [vmem:[#allocation8 + $0x20] sm:$0xff]
    %v221 = vld [vmem:[#allocation8 + $0x28] sm:$0xff]
    %v222 = vld [vmem:[#allocation8 + $0x30] sm:$0xff]
    %v223 = vld [vmem:[#allocation8 + $0x38] sm:$0xff]
    %v224 = vld [vmem:[#allocation8 + $0x40] sm:$0xff]
    %v225 = vld [vmem:[#allocation8 + $0x48] sm:$0xff]
    %v226 = vld [vmem:[#allocation8 + $0x50] sm:$0xff]
    %v227 = vld [vmem:[#allocation8 + $0x58] sm:$0xff]
    %vm228 = vcmask 785408
    %v230 = vsel %vm228, %v216, 0
    %v233 = vsel %vm228, %v217, 0
    %v236 = vsel %vm228, %v218, 0
    %v239 = vsel %vm228, %v219, 0
    %v242 = vsel %vm228, %v220, 0
    %v245 = vsel %vm228, %v221, 0
    %v248 = vsel %vm228, %v222, 0
    %v251 = vsel %vm228, %v223, 0
    %v254 = vsel %vm228, %v224, 0
    %v257 = vsel %vm228, %v225, 0
    %v260 = vsel %vm228, %v226, 0
    %v263 = vsel %vm228, %v227, 0
    %265 = vmatpush.msra.mxu0 0.0
    %266 = vmatpush.msra.mxu0 0.0
    %267 = vmatpush.msra.mxu0 0.0
    %268 = vmatpush.msra.mxu0 0.0
    %269 = vmatpush.msra.mxu0 %v214
    %270 = vmatpush.msra.mxu0 %v211
    %271 = vmatpush.msra.mxu0 %v208
    %272 = vmatpush.msra.mxu0 %v205
    %273 = vmatpush.msra.mxu0 %v202
    %274 = vmatpush.msra.mxu0 %v199
    %275 = vmatpush.msra.mxu0 %v196
    %276 = vmatpush.msra.mxu0 %v193
    %277 = vmatpush.msra.mxu0 %v190
    %278 = vmatpush.msra.mxu0 %v187
    %279 = vmatpush.msra.mxu0 %v184
    %280 = vmatpush.msra.mxu0 %v181
    %281 = vmatmul.f32.gmra.mxu0 %v230
    %v282 = vpop.f32.mrf.mxu0
    %v283 = vadd.f32 0.0, %v282
    %284 = vmatmul.f32.gmra.mxu0 %v233
    %v285 = vpop.f32.mrf.mxu0
    %v286 = vadd.f32 0.0, %v285
    %287 = vmatmul.f32.gmra.mxu0 %v236
    %v288 = vpop.f32.mrf.mxu0
    %v289 = vadd.f32 0.0, %v288
    %290 = vmatmul.f32.gmra.mxu0 %v239
    %v291 = vpop.f32.mrf.mxu0
    %v292 = vadd.f32 0.0, %v291
    %293 = vmatmul.f32.gmra.mxu0 %v242
    %v294 = vpop.f32.mrf.mxu0
    %v295 = vadd.f32 0.0, %v294
    %296 = vmatmul.f32.gmra.mxu0 %v245
    %v297 = vpop.f32.mrf.mxu0
    %v298 = vadd.f32 0.0, %v297
    %299 = vmatmul.f32.gmra.mxu0 %v248
    %v300 = vpop.f32.mrf.mxu0
    %v301 = vadd.f32 0.0, %v300
    %302 = vmatmul.f32.gmra.mxu0 %v251
    %v303 = vpop.f32.mrf.mxu0
    %v304 = vadd.f32 0.0, %v303
    %305 = vmatmul.f32.gmra.mxu0 %v254
    %v306 = vpop.f32.mrf.mxu0
    %v307 = vadd.f32 0.0, %v306
    %308 = vmatmul.f32.gmra.mxu0 %v257
    %v309 = vpop.f32.mrf.mxu0
    %v310 = vadd.f32 0.0, %v309
    %311 = vmatmul.f32.gmra.mxu0 %v260
    %v312 = vpop.f32.mrf.mxu0
    %v313 = vadd.f32 0.0, %v312
    %314 = vmatmul.f32.gmra.mxu0 %v263
    %v315 = vpop.f32.mrf.mxu0
    %v316 = vadd.f32 0.0, %v315
    %317 = vdwg.mxu0
    %v318 = vsub.f32 %v112, %v283
    %v319 = vsub.f32 %v113, %v286
    %v320 = vsub.f32 %v114, %v289
    %v321 = vsub.f32 %v115, %v292
    %v322 = vsub.f32 %v116, %v295
    %v323 = vsub.f32 %v117, %v298
    %v324 = vsub.f32 %v118, %v301
    %v325 = vsub.f32 %v119, %v304
    %v326 = vsub.f32 %v120, %v307
    %v327 = vsub.f32 %v121, %v310
    %v328 = vsub.f32 %v122, %v313
    %v329 = vsub.f32 %v123, %v316
    %v330 = vmul.f32 %v318, %v318
    %v331 = vmul.f32 %v319, %v319
    %v332 = vmul.f32 %v320, %v320
    %v333 = vmul.f32 %v321, %v321
    %v334 = vmul.f32 %v322, %v322
    %v335 = vmul.f32 %v323, %v323
    %v336 = vmul.f32 %v324, %v324
    %v337 = vmul.f32 %v325, %v325
    %v338 = vmul.f32 %v326, %v326
    %v339 = vmul.f32 %v327, %v327
    %v340 = vmul.f32 %v328, %v328
    %v341 = vmul.f32 %v329, %v329
    %v342 = vld [vmem:[#allocation2] sm:$0xff]
    %v343 = vld [vmem:[#allocation2 + $0x8] sm:$0xff]
    %v344 = vsel %vm126, %v330, 0.0
    %v345 = vsel %vm126, %v332, 0.0
    %v346 = vadd.f32 %v344, %v345
    %v347 = vsel %vm126, %v334, 0.0
    %v348 = vadd.f32 %v346, %v347
    %v349 = vsel %vm126, %v336, 0.0
    %v350 = vadd.f32 %v348, %v349
    %v351 = vsel %vm126, %v338, 0.0
    %v352 = vadd.f32 %v350, %v351
    %v353 = vsel %vm126, %v340, 0.0
    %v354 = vadd.f32 %v352, %v353
    %v355 = vsel %vm126, %v331, 0.0
    %v356 = vsel %vm126, %v333, 0.0
    %v357 = vadd.f32 %v355, %v356
    %v358 = vsel %vm126, %v335, 0.0
    %v359 = vadd.f32 %v357, %v358
    %v360 = vsel %vm126, %v337, 0.0
    %v361 = vadd.f32 %v359, %v360
    %v362 = vsel %vm126, %v339, 0.0
    %v363 = vadd.f32 %v361, %v362
    %v364 = vsel %vm126, %v341, 0.0
    %v365 = vadd.f32 %v363, %v364
    %v366 = vadd.f32 %v342, %v354
    %v367 = vadd.f32 %v343, %v365
    %368 = vst.msk [vmem:[#allocation2] sm:$0xff] %vm126, %v366
    %369 = vst.msk [vmem:[#allocation2 + $0x8] sm:$0xff] %vm126, %v367
    // Predicated region
    $region38: #{tpu_custom_call.1} parent=1 // pred_check
      %p370 = pneg %p81
    $region39: #{tpu_custom_call.1} parent=1 // pred_check_branch
      %372 = sbr.rel (%p370) target = $region41
    $region40: #{tpu_custom_call.1} parent=1 // pred_region
      %v373 = vld [vmem:[#allocation2] sm:$0xff]
      %v374 = vld [vmem:[#allocation2 + $0x8] sm:$0xff]
      %v375 = vsel %vm126, %v373, 0.0
      %v376 = vsel %vm126, %v374, 0.0
      %v377 = vadd.f32 %v375, %v376
      %378 = vadd.xlane.f32.xlu0 %v377
      %v379 = vpop.xlane.xlu0 %378
      %v380 = vrot.slane %v379, 4
      %v381 = vadd.f32 %v379, %v380
      %v382 = vrot.slane %v381, 2
      %v383 = vadd.f32 %v381, %v382
      %v384 = vrot.slane %v383, 1
      %v385 = vadd.f32 %v383, %v384
      %s386 = vtos %v385
      %s387 = smul.f32 %s386, 0.0006510417
      %s388 = scalar_lea.smem [#allocation11], 0
      %389 = sst [smem:[%s388]] %s387
    $region41: #{tpu_custom_call.1} parent=1 // pred_fallthru
      _
    // Predicated region
    $region42: #{tpu_custom_call.1} parent=1 // pred_check
      _
    $region43: #{tpu_custom_call.1} parent=1 // pred_check_branch
      %391 = sbr.rel (0) target = $region45
    $region44: #{tpu_custom_call.1} parent=1 // pred_region
      %393 = vsyncadd [#allocation5], 0
      %s395 = sshll.u32 %s4, 4
      %s396 = int_to_ptr.hbm [resolvable:$true] %s395
      %398 = dma.smem_to_hbm [#allocation11], 16, %s396, [#allocation5]
    $region45: #{tpu_custom_call.1} parent=1 // pred_fallthru
      _
    // Predicated region
    $region46: #{tpu_custom_call.1} parent=1 // pred_check
      _
    $region47: #{tpu_custom_call.1} parent=1 // pred_check_branch
      %400 = sbr.rel (0) target = $region49
    $region48: #{tpu_custom_call.1} parent=1 // pred_region
      %402 = dma.done [#allocation5], 16
    $region49: #{tpu_custom_call.1} parent=1 // pred_fallthru
      _
    %403 = sfence
    %404 = vsyncpa [#allocation4], 1
    %405 = vsyncpa [#allocation7], 1
    %406 = vsyncpa [#allocation10], 1
    %407 = vsyncpa [#allocation5], 1

</llo_original>
